<compile_context>
chip_gen: v7x
topology: tpu7x:2x2x1
jax: 0.10.0
libtpu: 0.0.40
codegen_flags: <defaults>
</compile_context>

<pallas_src>
import functools

import jax
import jax.numpy as jnp
from jax.experimental import pallas as pl
from jax.experimental.pallas import tpu as pltpu


# ----------------------------------------------------------------------------- helpers
_SQRT_2_OVER_PI = 0.7978845608028654


def _gelu_tanh_f32(x):
    # tanh-approx GELU: the transcendental goes to the (otherwise idle) EUP
    # slot instead of an erf polynomial in the VALU slot.
    x = x.astype(jnp.float32)
    inner = jnp.float32(_SQRT_2_OVER_PI) * (x + jnp.float32(0.044715) * x * x * x)
    return 0.5 * x * (1.0 + jnp.tanh(inner))


def _round_up(x, m):
    return (x + m - 1) // m * m


def _cdiv(a, b):
    return -(-a // b)


def _feature_pad(d):
    """Pad a feature dim: 128 lane minimum; multiples of 256 above that (MXU)."""
    p = _round_up(d, 128)
    if p <= 128:
        return p
    return _round_up(d, 256)


def _pad2d(a, rows, cols):
    return jnp.pad(a, ((0, rows - a.shape[0]), (0, cols - a.shape[1])))


def _pad_row(v, cols):
    return jnp.pad(v, (0, cols - v.shape[0])).reshape(1, cols).astype(jnp.float32)


def _vmem_capacity_bytes():
    try:
        cap = int(pltpu.get_tpu_info().vmem_capacity_bytes)
        if cap > 0:
            return cap
    except Exception:
        pass
    return 64 << 20  # conservative default (v7x per-TC VMEM)


@functools.cache
def _single_buffer_supported():
    """Probe pipeline_mode=pl.Buffered(1) for constant-index operands once."""
    try:
        def probe_kernel(a_ref, o_ref):
            o_ref[...] = a_ref[...] + 1.0

        a = jnp.zeros((8, 128), jnp.float32)
        out = pl.pallas_call(
            probe_kernel,
            out_shape=jax.ShapeDtypeStruct((16, 128), jnp.float32),
            grid=(2,),
            in_specs=[pl.BlockSpec((8, 128), lambda i: (0, 0),
                                   pipeline_mode=pl.Buffered(1))],
            out_specs=pl.BlockSpec((8, 128), lambda i: (i, 0)),
        )(a)
        return bool(jnp.allclose(out, 1.0))
    except Exception:
        return False


# ----------------------------------------------------------------------------- kernels
def _mlp_kernel_resident(x_ref, w1_ref, b1_ref, w2_ref, b2_ref, s2_ref, t2_ref, o_ref):
    """Grid (num_m,): weights fully VMEM-resident, x/out tiles stream."""
    x = x_ref[...].astype(jnp.bfloat16)

    h = jnp.dot(x, w1_ref[...], preferred_element_type=jnp.float32) + b1_ref[...]
    h = _gelu_tanh_f32(h)

    y = jnp.dot(h.astype(jnp.bfloat16), w2_ref[...],
                preferred_element_type=jnp.float32) + b2_ref[...]
    y = _gelu_tanh_f32(y)

    # Dropout(eval) = identity
    o_ref[...] = (y * s2_ref[...] + t2_ref[...]).astype(o_ref.dtype)


def _mlp_kernel_ktiled(x_ref, w1_ref, b1_ref, w2_ref, b2_ref, s2_ref, t2_ref,
                       o_ref, acc_ref):
    """Grid (num_m, num_k): W1 column-chunks / W2' row-chunks stream over k,
    partial products accumulate into a (tm, hid_p) f32 VMEM scratch."""
    k = pl.program_id(1)

    x = x_ref[...].astype(jnp.bfloat16)
    h = jnp.dot(x, w1_ref[...], preferred_element_type=jnp.float32) + b1_ref[...]
    h = _gelu_tanh_f32(h)
    contrib = jnp.dot(h.astype(jnp.bfloat16), w2_ref[...],
                      preferred_element_type=jnp.float32)

    @pl.when(k == 0)
    def _():
        acc_ref[...] = contrib

    @pl.when(k > 0)
    def _():
        acc_ref[...] += contrib

    @pl.when(k == pl.num_programs(1) - 1)
    def _():
        y = acc_ref[...] + b2_ref[...]
        y = _gelu_tanh_f32(y)
        o_ref[...] = (y * s2_ref[...] + t2_ref[...]).astype(o_ref.dtype)


# ----------------------------------------------------------------------------- tiling
def _vmem_estimate(tm, tk, in_p, hid_p, num_k, x_bytes, out_bytes, single_buffer):
    wbuf = 1 if (num_k == 1 and single_buffer) else 2
    weights = (in_p * tk + tk * hid_p) * 2 * wbuf         # W1 / W2' blocks (bf16)
    vecs = (tk * wbuf + 3 * hid_p) * 4                    # b1 chunk + b2/s2/t2 (f32)
    x_tile = 2 * tm * in_p * x_bytes                      # double-buffered x tile
    o_tile = 2 * tm * hid_p * out_bytes                   # double-buffered out tile
    acc = tm * hid_p * 4 if num_k > 1 else 0              # f32 accumulator scratch
    interm = tm * tk * 6 + tm * hid_p * 4                 # h (f32 + bf16 copy) + f32 dot result
    return weights + vecs + x_tile + o_tile + acc + interm


def _choose_tiling(n, input_dim, hidden_dim, tile_m, x_bytes, out_bytes, budget,
                   single_buffer):
    in_p = _feature_pad(input_dim)
    hid_base = _feature_pad(hidden_dim)
    chunk_mult = 128 if hid_base <= 128 else 256

    n_8 = _round_up(max(n, 1), 8)
    tm0 = _round_up(tile_m, 8)
    if n_8 >= 16:
        # >= 2 batch steps so the "parallel" axis can shard across 2 TCs (v7x).
        tm0 = min(tm0, _round_up(_cdiv(n_8, 2), 8))
    else:
        tm0 = min(tm0, n_8)
    tm0 = max(tm0, 8)

    num_k = 1
    while True:
        tk = _round_up(_cdiv(hid_base, num_k), chunk_mult)
        hid_p = tk * num_k
        tm = tm0
        while tm > 64 and _vmem_estimate(tm, tk, in_p, hid_p, num_k, x_bytes,
                                         out_bytes, single_buffer) > budget:
            tm = max(64, _round_up(tm // 2, 8))
        est = _vmem_estimate(tm, tk, in_p, hid_p, num_k, x_bytes, out_bytes,
                             single_buffer)
        if est <= budget or tk <= chunk_mult:
            return tm, tk, num_k, in_p, hid_p, est
        num_k *= 2


# ----------------------------------------------------------------------------- wrapper
@functools.partial(jax.jit, static_argnames=("tile_m", "out_dtype", "single_buffer"))
def _mlp_forward_impl(x, params, *, tile_m, out_dtype, single_buffer):
    n, input_dim = x.shape
    hidden_dim = params["w1"].shape[1]
    eps = 1e-5
    od = jnp.dtype(x.dtype) if out_dtype is None else jnp.dtype(out_dtype)

    # ---- Fold BatchNorms (plain-JAX glue, one-time transforms) -------------
    s1 = params["bn1_gamma"] / jnp.sqrt(params["bn1_var"] + eps)
    t1 = params["bn1_beta"] - params["bn1_mean"] * s1
    s2 = params["bn2_gamma"] / jnp.sqrt(params["bn2_var"] + eps)
    t2 = params["bn2_beta"] - params["bn2_mean"] * s2
    # Fold BN1 into the second linear: (g*s1 + t1) @ W2 + b2
    w2_eff = s1[:, None] * params["w2"]
    b2_eff = params["b2"] + t1 @ params["w2"]

    # ---- Generation-aware VMEM budget & tiling ------------------------------
    cap = _vmem_capacity_bytes()
    budget = int(cap * 0.75)                       # headroom for Mosaic internals
    x_bytes = jnp.dtype(x.dtype).itemsize
    out_bytes = od.itemsize
    tm, tk, num_k, in_p, hid_p, est = _choose_tiling(
        n, input_dim, hidden_dim, tile_m, x_bytes, out_bytes, budget, single_buffer)

    n_pad = _round_up(n, tm)
    num_m = n_pad // tm
    vmem_limit = int(min(max(est + (8 << 20), 32 << 20), cap))

    # ---- Build operands (skip the extra HBM pass when already aligned) -----
    if (n_pad != n) or (in_p != input_dim):
        x_in = _pad2d(x, n_pad, in_p).astype(jnp.bfloat16)   # fused pad + bf16 cast
    else:
        x_in = x                                             # bf16 cast happens in-kernel
    w1_p = _pad2d(params["w1"], in_p, hid_p).astype(jnp.bfloat16)
    w2_p = _pad2d(w2_eff, hid_p, hid_p).astype(jnp.bfloat16)
    b1_p = _pad_row(params["b1"], hid_p)
    b2_p = _pad_row(b2_eff, hid_p)
    s2_p = _pad_row(s2, hid_p)
    t2_p = _pad_row(t2, hid_p)

    # ---- Specs ---------------------------------------------------------------
    if num_k == 1:
        def const2d(shape):
            if single_buffer:
                return pl.BlockSpec(shape, lambda i: (0, 0),
                                    pipeline_mode=pl.Buffered(1))
            return pl.BlockSpec(shape, lambda i: (0, 0))

        grid = (num_m,)
        in_specs = [
            pl.BlockSpec((tm, in_p), lambda i: (i, 0)),   # x tile (streams)
            const2d((in_p, hid_p)),                       # W1 (resident)
            const2d((1, hid_p)),                          # b1
            const2d((hid_p, hid_p)),                      # W2' = s1*W2 (resident)
            const2d((1, hid_p)),                          # b2' = b2 + t1@W2
            const2d((1, hid_p)),                          # BN2 scale
            const2d((1, hid_p)),                          # BN2 shift
        ]
        out_specs = pl.BlockSpec((tm, hid_p), lambda i: (i, 0))
        kernel = _mlp_kernel_resident
        scratch = ()
        dims = ("parallel",)
    else:
        def const2d(shape):
            if single_buffer:
                return pl.BlockSpec(shape, lambda i, k: (0, 0),
                                    pipeline_mode=pl.Buffered(1))
            return pl.BlockSpec(shape, lambda i, k: (0, 0))

        grid = (num_m, num_k)
        in_specs = [
            pl.BlockSpec((tm, in_p), lambda i, k: (i, 0)),    # x (resident per m-step)
            pl.BlockSpec((in_p, tk), lambda i, k: (0, k)),    # W1 column chunk
            pl.BlockSpec((1, tk), lambda i, k: (0, k)),       # b1 chunk
            pl.BlockSpec((tk, hid_p), lambda i, k: (k, 0)),   # W2' row chunk
            const2d((1, hid_p)),                              # b2'
            const2d((1, hid_p)),                              # BN2 scale
            const2d((1, hid_p)),                              # BN2 shift
        ]
        out_specs = pl.BlockSpec((tm, hid_p), lambda i, k: (i, 0))
        kernel = _mlp_kernel_ktiled
        scratch = (pltpu.VMEM((tm, hid_p), jnp.float32),)
        dims = ("parallel", "arbitrary")

    out = pl.pallas_call(
        kernel,
        out_shape=jax.ShapeDtypeStruct((n_pad, hid_p), od),
        grid=grid,
        in_specs=in_specs,
        out_specs=out_specs,
        scratch_shapes=scratch,
        compiler_params=pltpu.CompilerParams(
            dimension_semantics=dims,
            vmem_limit_bytes=vmem_limit,
        ),
    )(x_in, w1_p, b1_p, w2_p, b2_p, s2_p, t2_p)

    if (n_pad != n) or (hid_p != hidden_dim):
        out = out[:n, :hidden_dim]
    return out


def mlp_forward(x, params, *, tile_m=512, out_dtype=None):
    """x: (N, input_dim). Returns (N, hidden_dim) in out_dtype (default x.dtype;
    pass jnp.bfloat16 to halve writeback traffic)."""
    return _mlp_forward_impl(x, params, tile_m=tile_m, out_dtype=out_dtype,
                             single_buffer=_single_buffer_supported())


# ----------------------------------------------------------------------------- params / reference
def init_params(key, input_dim, hidden_dim):
    """Deterministic parameter init (mimics shapes of the PyTorch module)."""
    ks = jax.random.split(key, 12)
    # nn.Linear stores weight as (out, in); we keep (in, out) for x @ W.
    lim1 = 1.0 / jnp.sqrt(input_dim)
    lim2 = 1.0 / jnp.sqrt(hidden_dim)
    return {
        "w1": jax.random.uniform(ks[0], (input_dim, hidden_dim), jnp.float32, -lim1, lim1),
        "b1": jax.random.uniform(ks[1], (hidden_dim,), jnp.float32, -lim1, lim1),
        "w2": jax.random.uniform(ks[2], (hidden_dim, hidden_dim), jnp.float32, -lim2, lim2),
        "b2": jax.random.uniform(ks[3], (hidden_dim,), jnp.float32, -lim2, lim2),
        "bn1_gamma": 1.0 + 0.1 * jax.random.normal(ks[4], (hidden_dim,), jnp.float32),
        "bn1_beta": 0.1 * jax.random.normal(ks[5], (hidden_dim,), jnp.float32),
        "bn1_mean": 0.05 * jax.random.normal(ks[6], (hidden_dim,), jnp.float32),
        "bn1_var": jnp.abs(1.0 + 0.1 * jax.random.normal(ks[7], (hidden_dim,), jnp.float32)),
        "bn2_gamma": 1.0 + 0.05 * jax.random.normal(ks[8], (hidden_dim,), jnp.float32),
        "bn2_beta": 0.05 * jax.random.normal(ks[9], (hidden_dim,), jnp.float32),
        "bn2_mean": 0.025 * jax.random.normal(ks[10], (hidden_dim,), jnp.float32),
        "bn2_var": jnp.abs(1.0 + 0.05 * jax.random.normal(ks[11], (hidden_dim,), jnp.float32)),
    }


def mlp_reference(x, params):
    """Pure-JAX f32 reference matching the PyTorch module (exact erf GELU,
    eval-mode BN, no dropout).  The kernel uses tanh-approx GELU + bf16 MXU
    operands, covered by the loosened tolerance below."""
    eps = 1e-5
    h = x @ params["w1"] + params["b1"]
    h = jax.nn.gelu(h, approximate=False)
    h = (h - params["bn1_mean"]) / jnp.sqrt(params["bn1_var"] + eps) * params["bn1_gamma"] + params["bn1_beta"]
    h = h @ params["w2"] + params["b2"]
    h = jax.nn.gelu(h, approximate=False)
    h = (h - params["bn2_mean"]) / jnp.sqrt(params["bn2_var"] + eps) * params["bn2_gamma"] + params["bn2_beta"]
    return h


if __name__ == "__main__":
    key = jax.random.PRNGKey(0)
    k_x, k_p = jax.random.split(key)

    batch = 8
    input_dim = 32
    hidden_dim = 32

    x = jax.random.normal(k_x, (batch, input_dim), jnp.float32)
    params = init_params(k_p, input_dim, hidden_dim)

    out = mlp_forward(x, params)
    out = jax.block_until_ready(out)

    ref = mlp_reference(x, params)
    assert out.shape == (batch, hidden_dim)
    # bf16 MXU operands (f32 accumulation) + tanh-approx GELU -> loosened tol.
    assert jnp.allclose(out, ref, atol=5e-2, rtol=5e-2), "mismatch vs reference"

    print("KERNEL_OK")
</pallas_src>

<mosaic_0001>
module attributes {stable_mosaic.version = 11 : i64} {
  func.func @probe_kernel(%arg0: i32, %arg1: memref<8x128xf32, #tpu.memory_space<vmem>>, %arg2: memref<8x128xf32, #tpu.memory_space<vmem>>) attributes {dimension_semantics = [#tpu.dimension_semantics<arbitrary>], iteration_bounds = array<i64: 2>, scalar_prefetch = 0 : i64, scratch_operands = 0 : i64, tpu.core_type = #tpu.core_type<tc>, window_params = [{pipeline_mode = #tpu.pipeline_mode<synchronous>, transform_indices = @transform_0, window_bounds = array<i64: 8, 128>}, {transform_indices = @transform_1, window_bounds = array<i64: 8, 128>}]} {
    %c0 = arith.constant 0 : index
    %c0_0 = arith.constant 0 : index
    %0 = vector.load %arg1[%c0, %c0_0] : memref<8x128xf32, #tpu.memory_space<vmem>>, vector<8x128xf32>
    %cst = arith.constant 1.000000e+00 : f32
    %1 = vector.broadcast %cst : f32 to vector<8x128xf32>
    %2 = arith.addf %0, %1 : vector<8x128xf32>
    %c0_1 = arith.constant 0 : index
    %c0_2 = arith.constant 0 : index
    %3 = vector.load %arg2[%c0_1, %c0_2] : memref<8x128xf32, #tpu.memory_space<vmem>>, vector<8x128xf32>
    tpu.vector_store %arg2[%c0_1, %c0_2], %2 {strides = array<i32>} : memref<8x128xf32, #tpu.memory_space<vmem>>, vector<8x128xf32>,
    return
  }
  func.func @transform_0(%arg0: i32) -> (i32, i32) {
    %c0_i32 = arith.constant 0 : i32
    %c0_i32_0 = arith.constant 0 : i32
    %c0_i32_1 = arith.constant 0 : i32
    return %c0_i32, %c0_i32_0 : i32, i32
  }
  func.func @transform_1(%arg0: i32) -> (i32, i32) {
    %c0_i32 = arith.constant 0 : i32
    %c0_i32_0 = arith.constant 0 : i32
    return %arg0, %c0_i32 : i32, i32
  }
}

module attributes {stable_mosaic.version = 11 : i64} {
  func.func @_mlp_kernel_resident(%arg0: i32, %arg1: memref<8x128xbf16, #tpu.memory_space<vmem>>, %arg2: memref<128x128xbf16, #tpu.memory_space<vmem>>, %arg3: memref<1x128xf32, #tpu.memory_space<vmem>>, %arg4: memref<128x128xbf16, #tpu.memory_space<vmem>>, %arg5: memref<1x128xf32, #tpu.memory_space<vmem>>, %arg6: memref<1x128xf32, #tpu.memory_space<vmem>>, %arg7: memref<1x128xf32, #tpu.memory_space<vmem>>, %arg8: memref<8x128xf32, #tpu.memory_space<vmem>>) attributes {dimension_semantics = [#tpu.dimension_semantics<parallel>], iteration_bounds = array<i64: 1>, scalar_prefetch = 0 : i64, scratch_operands = 0 : i64, tpu.core_type = #tpu.core_type<tc>, window_params = [{transform_indices = @transform_0, window_bounds = array<i64: 8, 128>}, {pipeline_mode = #tpu.pipeline_mode<synchronous>, transform_indices = @transform_1, window_bounds = array<i64: 128, 128>}, {pipeline_mode = #tpu.pipeline_mode<synchronous>, transform_indices = @transform_2, window_bounds = array<i64: 1, 128>}, {pipeline_mode = #tpu.pipeline_mode<synchronous>, transform_indices = @transform_3, window_bounds = array<i64: 128, 128>}, {pipeline_mode = #tpu.pipeline_mode<synchronous>, transform_indices = @transform_4, window_bounds = array<i64: 1, 128>}, {pipeline_mode = #tpu.pipeline_mode<synchronous>, transform_indices = @transform_5, window_bounds = array<i64: 1, 128>}, {pipeline_mode = #tpu.pipeline_mode<synchronous>, transform_indices = @transform_6, window_bounds = array<i64: 1, 128>}, {transform_indices = @transform_7, window_bounds = array<i64: 8, 128>}]} {
    %c0 = arith.constant 0 : index
    %c0_0 = arith.constant 0 : index
    %0 = vector.load %arg1[%c0, %c0_0] : memref<8x128xbf16, #tpu.memory_space<vmem>>, vector<8x128xbf16>
    %c0_1 = arith.constant 0 : index
    %c0_2 = arith.constant 0 : index
    %1 = vector.load %arg2[%c0_1, %c0_2] : memref<128x128xbf16, #tpu.memory_space<vmem>>, vector<128x128xbf16>
    %cst = arith.constant dense<0.000000e+00> : vector<8x128xf32>
    %2 = tpu.matmul %0, %1, %cst {dimension_numbers = #tpu.dot_dimension_numbers<[1], [0], [0], [1], [0, 0, 1, 1], [], []>} : vector<8x128xbf16>, vector<128x128xbf16>, vector<8x128xf32> -> vector<8x128xf32>
    %c0_3 = arith.constant 0 : index
    %c0_4 = arith.constant 0 : index
    %3 = vector.load %arg3[%c0_3, %c0_4] : memref<1x128xf32, #tpu.memory_space<vmem>>, vector<1x128xf32>
    %4 = vector.broadcast %3 : vector<1x128xf32> to vector<8x128xf32>
    %5 = arith.addf %2, %4 : vector<8x128xf32>
    %cst_5 = arith.constant 4.471500e-02 : f32
    %6 = vector.broadcast %cst_5 : f32 to vector<8x128xf32>
    %7 = arith.mulf %6, %5 : vector<8x128xf32>
    %8 = arith.mulf %7, %5 : vector<8x128xf32>
    %9 = arith.mulf %8, %5 : vector<8x128xf32>
    %10 = arith.addf %5, %9 : vector<8x128xf32>
    %cst_6 = arith.constant 0.797884583 : f32
    %11 = vector.broadcast %cst_6 : f32 to vector<8x128xf32>
    %12 = arith.mulf %11, %10 : vector<8x128xf32>
    %cst_7 = arith.constant 5.000000e-01 : f32
    %13 = vector.broadcast %cst_7 : f32 to vector<8x128xf32>
    %14 = arith.mulf %13, %5 : vector<8x128xf32>
    %15 = math.tanh %12 : vector<8x128xf32>
    %cst_8 = arith.constant 1.000000e+00 : f32
    %16 = vector.broadcast %cst_8 : f32 to vector<8x128xf32>
    %17 = arith.addf %16, %15 : vector<8x128xf32>
    %18 = arith.mulf %14, %17 : vector<8x128xf32>
    %19 = arith.truncf %18 : vector<8x128xf32> to vector<8x128xbf16>
    %c0_9 = arith.constant 0 : index
    %c0_10 = arith.constant 0 : index
    %20 = vector.load %arg4[%c0_9, %c0_10] : memref<128x128xbf16, #tpu.memory_space<vmem>>, vector<128x128xbf16>
    %cst_11 = arith.constant dense<0.000000e+00> : vector<8x128xf32>
    %21 = tpu.matmul %19, %20, %cst_11 {dimension_numbers = #tpu.dot_dimension_numbers<[1], [0], [0], [1], [0, 0, 1, 1], [], []>} : vector<8x128xbf16>, vector<128x128xbf16>, vector<8x128xf32> -> vector<8x128xf32>
    %c0_12 = arith.constant 0 : index
    %c0_13 = arith.constant 0 : index
    %22 = vector.load %arg5[%c0_12, %c0_13] : memref<1x128xf32, #tpu.memory_space<vmem>>, vector<1x128xf32>
    %23 = vector.broadcast %22 : vector<1x128xf32> to vector<8x128xf32>
    %24 = arith.addf %21, %23 : vector<8x128xf32>
    %cst_14 = arith.constant 4.471500e-02 : f32
    %25 = vector.broadcast %cst_14 : f32 to vector<8x128xf32>
    %26 = arith.mulf %25, %24 : vector<8x128xf32>
    %27 = arith.mulf %26, %24 : vector<8x128xf32>
    %28 = arith.mulf %27, %24 : vector<8x128xf32>
    %29 = arith.addf %24, %28 : vector<8x128xf32>
    %cst_15 = arith.constant 0.797884583 : f32
    %30 = vector.broadcast %cst_15 : f32 to vector<8x128xf32>
    %31 = arith.mulf %30, %29 : vector<8x128xf32>
    %cst_16 = arith.constant 5.000000e-01 : f32
    %32 = vector.broadcast %cst_16 : f32 to vector<8x128xf32>
    %33 = arith.mulf %32, %24 : vector<8x128xf32>
    %34 = math.tanh %31 : vector<8x128xf32>
    %cst_17 = arith.constant 1.000000e+00 : f32
    %35 = vector.broadcast %cst_17 : f32 to vector<8x128xf32>
    %36 = arith.addf %35, %34 : vector<8x128xf32>
    %37 = arith.mulf %33, %36 : vector<8x128xf32>
    %c0_18 = arith.constant 0 : index
    %c0_19 = arith.constant 0 : index
    %38 = vector.load %arg6[%c0_18, %c0_19] : memref<1x128xf32, #tpu.memory_space<vmem>>, vector<1x128xf32>
    %39 = vector.broadcast %38 : vector<1x128xf32> to vector<8x128xf32>
    %40 = arith.mulf %37, %39 : vector<8x128xf32>
    %c0_20 = arith.constant 0 : index
    %c0_21 = arith.constant 0 : index
    %41 = vector.load %arg7[%c0_20, %c0_21] : memref<1x128xf32, #tpu.memory_space<vmem>>, vector<1x128xf32>
    %42 = vector.broadcast %41 : vector<1x128xf32> to vector<8x128xf32>
    %43 = arith.addf %40, %42 : vector<8x128xf32>
    %c0_22 = arith.constant 0 : index
    %c0_23 = arith.constant 0 : index
    %44 = vector.load %arg8[%c0_22, %c0_23] : memref<8x128xf32, #tpu.memory_space<vmem>>, vector<8x128xf32>
    tpu.vector_store %arg8[%c0_22, %c0_23], %43 {strides = array<i32>} : memref<8x128xf32, #tpu.memory_space<vmem>>, vector<8x128xf32>,
    return
  }
  func.func @transform_0(%arg0: i32) -> (i32, i32) {
    %c0_i32 = arith.constant 0 : i32
    %c0_i32_0 = arith.constant 0 : i32
    return %arg0, %c0_i32 : i32, i32
  }
  func.func @transform_1(%arg0: i32) -> (i32, i32) {
    %c0_i32 = arith.constant 0 : i32
    %c0_i32_0 = arith.constant 0 : i32
    %c0_i32_1 = arith.constant 0 : i32
    return %c0_i32, %c0_i32_0 : i32, i32
  }
  func.func @transform_2(%arg0: i32) -> (i32, i32) {
    %c0_i32 = arith.constant 0 : i32
    %c0_i32_0 = arith.constant 0 : i32
    %c0_i32_1 = arith.constant 0 : i32
    return %c0_i32, %c0_i32_0 : i32, i32
  }
  func.func @transform_3(%arg0: i32) -> (i32, i32) {
    %c0_i32 = arith.constant 0 : i32
    %c0_i32_0 = arith.constant 0 : i32
    %c0_i32_1 = arith.constant 0 : i32
    return %c0_i32, %c0_i32_0 : i32, i32
  }
  func.func @transform_4(%arg0: i32) -> (i32, i32) {
    %c0_i32 = arith.constant 0 : i32
    %c0_i32_0 = arith.constant 0 : i32
    %c0_i32_1 = arith.constant 0 : i32
    return %c0_i32, %c0_i32_0 : i32, i32
  }
  func.func @transform_5(%arg0: i32) -> (i32, i32) {
    %c0_i32 = arith.constant 0 : i32
    %c0_i32_0 = arith.constant 0 : i32
    %c0_i32_1 = arith.constant 0 : i32
    return %c0_i32, %c0_i32_0 : i32, i32
  }
  func.func @transform_6(%arg0: i32) -> (i32, i32) {
    %c0_i32 = arith.constant 0 : i32
    %c0_i32_0 = arith.constant 0 : i32
    %c0_i32_1 = arith.constant 0 : i32
    return %c0_i32, %c0_i32_0 : i32, i32
  }
  func.func @transform_7(%arg0: i32) -> (i32, i32) {
    %c0_i32 = arith.constant 0 : i32
    %c0_i32_0 = arith.constant 0 : i32
    return %arg0, %c0_i32 : i32, i32
  }
}

</mosaic_0001>

<llo_original>
// kernel: tpu_custom_call.1
$region0: #{tpu_custom_call.1}
  #allocation0 [shape = 'u32[]', space=smem, size = 0x4, offset = 0x4, fixed_abs, tag = 'smem constant byte address 0x4 - core index']
  #allocation1 [shape = 'u32[144,128]{1,0:T(1,128)}', space=vmem, size = 0x12000, scoped, tag = 'internal scratch']
  %s0 = inlined_call_operand.hbm [shape: f32[8,128], index: 0, kind: input, shape index: {}]
  %s1 = inlined_call_operand.hbm [shape: f32[16,128], index: 1, kind: output, shape index: {}]
  %s2 = sld [smem:[#allocation0]]
  $region41: #{tpu_custom_call.1} parent=0
    _
  %s4 = ssub.s32 1, %s2
  %s5 = scalar_select 0, %s4, %s2
  $region1: #{tpu_custom_call.1} parent=0
    #allocation2 [shape = 'u8[4096]{0}', space=vmem, size = 0x1000, scoped, tag = 'input window, operand 0, single buffered']
    #allocation3 [shape = 's32[2]{0}', space=sflag, size = 0x8, scoped, tag = 'scoped memory for tpu_custom_call.1']
    #allocation4 [shape = 's32[2]{0}', space=sflag, size = 0x8, scoped, tag = 'scoped memory for tpu_custom_call.1']
    #allocation5 [shape = 'u8[8192]{0}', space=vmem, size = 0x2000, scoped, tag = 'output window, operand 0']
    %6 = vsyncpa [#allocation3], 0
    %7 = vsyncpa [#allocation4], 0
    %s8 = scalar_lea.sflag [#allocation4], 1
    %9 = vsyncpa %s8, 0
    loop: start=0, step=1, limit=4
    $region2: #{tpu_custom_call.1} parent=1 // loop_pre_header
      _
    $region3: #{tpu_custom_call.1} parent=1 // loop_header
      %s11 = sphi 0, %s15
      %p12 = scmp.ge.s32.totalorder %s11, 4
      %s19 = sphi 0, %s19
      %s21 = sphi 0, %s19
      %s22 = sphi 0, %s21
      %s36 = sphi 0, %s22
      %s42 = sphi 0, %s44
      %s45 = sphi 0, %s42
      %s46 = sphi 0, %s45
      %s62 = sphi 0, %s46
    $region4: #{tpu_custom_call.1} parent=1 // loop_header_branch
      %14 = sbr.rel (%p12) target = $region8
    $region5: #{tpu_custom_call.1} parent=1 // loop_body
      %s16 = ssub.s32 %s11, 1
      %s17 = ssub.s32 %s11, 2
      %s18 = sadd.s32 %s11, 1
      %s20 = sadd.s32 %s19, 1
      %p23 = scmp.eq.s32.totalorder %s11, 1
      %p24 = scmp.ne.s32.totalorder %s19, %s21
      %p25 = scmp.eq.s32.totalorder %s11, 0
      %p26 = por %p24, %p25
      %p27 = scmp.ne.s32.totalorder %s19, %s21
      %p28 = scmp.eq.s32.totalorder %s16, 1
      %p29 = por %p27, %p28
      %p30 = scmp.ne.s32.totalorder %s21, %s22
      %p31 = scmp.eq.s32.totalorder %s16, 0
      %p32 = por %p30, %p31
      %p33 = scmp.ne.s32.totalorder %s21, %s22
      %p34 = scmp.eq.s32.totalorder %s17, 1
      %p35 = por %p33, %p34
      %p37 = scmp.ne.s32.totalorder %s22, %s36
      %p38 = scmp.eq.s32.totalorder %s17, 0
      %p39 = por %p37, %p38
      %s40 = ssub.s32 %s11, %s18
      %p41 = scmp.eq.s32.totalorder %s40, 0
      %s43 = sadd.s32 %s42, 1
      %s44 = scalar_select %p41, %s42, %s43
      %p47 = pneg %p41
      %p48 = scmp.eq.s32.totalorder %s11, 1
      %p49 = por %p47, %p48
      %p50 = scmp.ne.s32.totalorder %s42, %s45
      %p51 = scmp.eq.s32.totalorder %s11, 0
      %p52 = por %p50, %p51
      %p53 = scmp.ne.s32.totalorder %s42, %s45
      %p54 = scmp.eq.s32.totalorder %s16, 1
      %p55 = por %p53, %p54
      %p56 = scmp.ne.s32.totalorder %s45, %s46
      %p57 = scmp.eq.s32.totalorder %s16, 0
      %p58 = por %p56, %p57
      %p59 = scmp.ne.s32.totalorder %s45, %s46
      %p60 = scmp.eq.s32.totalorder %s17, 1
      %p61 = por %p59, %p60
      %p63 = scmp.ne.s32.totalorder %s46, %s62
      %p64 = scmp.eq.s32.totalorder %s17, 0
      %p65 = por %p63, %p64
      %p66 = scmp.le.s32.totalorder 1, %s11
      %p67 = scmp.lt.s32.totalorder %s11, 3
      %p68 = pnand %p66, %p67
      %p69 = pneg %p68
      // Predicated region
      $region9: #{tpu_custom_call.1} parent=5 // pred_check
        _
      $region10: #{tpu_custom_call.1} parent=5 // pred_check_branch
        %71 = sbr.rel (%p68) target = $region12
      $region11: #{tpu_custom_call.1} parent=5 // pred_region
        %s72 = ssub.s32 %s11, 1
        // Predicated region
        $region13: #{tpu_custom_call.1} parent=11 // pred_check
          %p73 = pneg %p32
        $region14: #{tpu_custom_call.1} parent=11 // pred_check_branch
          %75 = sbr.rel (%p73) target = $region16
        $region15: #{tpu_custom_call.1} parent=11 // pred_region
          %s77 = ssub.s32 128, 128
          %78 = vsyncadd [#allocation3], %s77
          %s80 = sshll.u32 [#allocation2], 4
          %s81 = int_to_ptr.vmem [resolvable:$true] %s80
          %83 = dma.hbm_to_vmem [thread:$0]  %s0, 128, %s81, [#allocation3]
        $region16: #{tpu_custom_call.1} parent=11 // pred_fallthru
          _
      $region12: #{tpu_custom_call.1} parent=5 // pred_fallthru
        _
      %p84 = scmp.lt.s32.totalorder %s11, 2
      // Predicated region
      $region17: #{tpu_custom_call.1} parent=5 // pred_check
        %p85 = pneg %p84
      $region18: #{tpu_custom_call.1} parent=5 // pred_check_branch
        %87 = sbr.rel (%p85) target = $region20
      $region19: #{tpu_custom_call.1} parent=5 // pred_region
        _
      $region20: #{tpu_custom_call.1} parent=5 // pred_fallthru
        _
      %p88 = scmp.le.s32.totalorder 1, %s11
      %p89 = scmp.lt.s32.totalorder %s11, 3
      %p90 = pnand %p88, %p89
      %p91 = pneg %p90
      // Predicated region
      $region21: #{tpu_custom_call.1} parent=5 // pred_check
        _
      $region22: #{tpu_custom_call.1} parent=5 // pred_check_branch
        %93 = sbr.rel (%p90) target = $region24
      $region23: #{tpu_custom_call.1} parent=5 // pred_region
        %s94 = ssub.s32 %s11, 1
        // Predicated region
        $region25: #{tpu_custom_call.1} parent=23 // pred_check
          %p95 = pneg %p32
        $region26: #{tpu_custom_call.1} parent=23 // pred_check_branch
          %97 = sbr.rel (%p95) target = $region28
        $region27: #{tpu_custom_call.1} parent=23 // pred_region
          %98 = dma.done [#allocation3], 128
        $region28: #{tpu_custom_call.1} parent=23 // pred_fallthru
          _
        %p99 = pneg %p32
        %p100 = pneg %p29
        %p101 = pneg %p58
        %p102 = pneg %p55
        %s103 = sand.u32 %s45, 1
        %s104 = scalar_lea.sflag [#allocation4], %s103
        %s105 = sand.u32 %s45, 1
        %s106 = smul.addr %s105, 8
        %s107 = scalar_lea.vmem [#allocation5], %s106
        %v108 = vld [vmem:[#allocation2] sm:$0xff]
        %v109 = vadd.f32 %v108, 1.0
        %110 = vst [vmem:[%s107] sm:$0xff] %v109
        %s111 = sand.u32 %s45, 1
        %s112 = scalar_lea.sflag [#allocation4], %s111
        %s113 = sand.u32 %s45, 1
        %s114 = smul.addr %s113, 8
        %s115 = scalar_lea.vmem [#allocation5], %s114
        // Predicated region
        $region29: #{tpu_custom_call.1} parent=23 // pred_check
          %p116 = pneg %p55
        $region30: #{tpu_custom_call.1} parent=23 // pred_check_branch
          %118 = sbr.rel (%p116) target = $region32
        $region31: #{tpu_custom_call.1} parent=23 // pred_region
          %s120 = ssub.s32 128, 128
          %121 = vsyncadd %s112, %s120
          %s122 = smul.addr %s16, 128
          %s123 = scalar_lea.hbm %s1, %s122
          %s125 = sshll.u32 %s115, 4
          %s126 = int_to_ptr.vmem [resolvable:$true] %s125
          %128 = dma.vmem_to_hbm [thread:$0]  %s126, 128, %s123, %s112
        $region32: #{tpu_custom_call.1} parent=23 // pred_fallthru
          _
      $region24: #{tpu_custom_call.1} parent=5 // pred_fallthru
        _
      %p129 = scmp.le.s32.totalorder 2, %s11
      // Predicated region
      $region33: #{tpu_custom_call.1} parent=5 // pred_check
        %p130 = pneg %p129
      $region34: #{tpu_custom_call.1} parent=5 // pred_check_branch
        %132 = sbr.rel (%p130) target = $region36
      $region35: #{tpu_custom_call.1} parent=5 // pred_region
        %s133 = ssub.s32 %s11, 2
        // Predicated region
        $region37: #{tpu_custom_call.1} parent=35 // pred_check
          %p134 = pneg %p61
        $region38: #{tpu_custom_call.1} parent=35 // pred_check_branch
          %136 = sbr.rel (%p134) target = $region40
        $region39: #{tpu_custom_call.1} parent=35 // pred_region
          %s137 = sand.u32 %s46, 1
          %s138 = scalar_lea.sflag [#allocation4], %s137
          %s139 = sand.u32 %s46, 1
          %s140 = smul.addr %s139, 8
          %s141 = scalar_lea.vmem [#allocation5], %s140
          %142 = dma.done %s138, 128
        $region40: #{tpu_custom_call.1} parent=35 // pred_fallthru
          _
      $region36: #{tpu_custom_call.1} parent=5 // pred_fallthru
        _
    $region6: #{tpu_custom_call.1} parent=1 // loop_footer
      %s15 = sadd.s32 1, %s11
    $region7: #{tpu_custom_call.1} parent=1 // loop_footer_branch
      %10 = sbr.rel target = $region3
    $region8: #{tpu_custom_call.1} parent=1 // loop_exit
      _
    %143 = vsyncpa [#allocation3], 1
    %s144 = scalar_lea.sflag [#allocation3], 1
    %145 = vsyncpa %s144, 1
    %146 = vsyncpa [#allocation4], 1
    %s147 = scalar_lea.sflag [#allocation4], 1
    %148 = vsyncpa %s147, 1

// kernel: _mlp_forward_impl.1
$region0: #{_mlp_forward_impl.1}
  #allocation0 [shape = 'u32[]', space=smem, size = 0x4, offset = 0x4, fixed_abs, tag = 'smem constant byte address 0x4 - core index']
  #allocation1 [shape = 'u32[144,128]{1,0:T(1,128)}', space=vmem, size = 0x12000, scoped, tag = 'internal scratch']
  %s0 = inlined_call_operand.vmem [shape: bf16[8,128], index: 0, kind: input, shape index: {}]
  %s1 = inlined_call_operand.vmem [shape: bf16[128,128], index: 1, kind: input, shape index: {}]
  %s2 = inlined_call_operand.vmem [shape: f32[1,128], index: 2, kind: input, shape index: {}]
  %s3 = inlined_call_operand.vmem [shape: bf16[128,128], index: 3, kind: input, shape index: {}]
  %s4 = inlined_call_operand.vmem [shape: f32[1,128], index: 4, kind: input, shape index: {}]
  %s5 = inlined_call_operand.vmem [shape: f32[1,128], index: 5, kind: input, shape index: {}]
  %s6 = inlined_call_operand.vmem [shape: f32[1,128], index: 6, kind: input, shape index: {}]
  %s7 = inlined_call_operand.hbm [shape: f32[8,128], index: 7, kind: output, shape index: {}]
  %s8 = sld [smem:[#allocation0]]
  $region38: #{_mlp_forward_impl.1} parent=0
    _
  %s10 = ssub.s32 1, %s8
  %s11 = scalar_select 0, %s10, %s8
  $region1: #{_mlp_forward_impl.1} parent=0
    #allocation2 [shape = 'u8[4096]{0}', space=vmem, size = 0x1000, scoped, tag = 'output window, operand 0, single buffered']
    #allocation3 [shape = 's32[1]{0}', space=sflag, size = 0x4, scoped, tag = 'scoped memory for _mlp_forward_impl.1']
    %12 = vsyncpa [#allocation3], 0
    // Predicated region
    $region2: #{_mlp_forward_impl.1} parent=1 // pred_check
      _
    $region3: #{_mlp_forward_impl.1} parent=1 // pred_check_branch
      %14 = sbr.rel (0) target = $region5
    $region4: #{_mlp_forward_impl.1} parent=1 // pred_region
      _
    $region5: #{_mlp_forward_impl.1} parent=1 // pred_fallthru
      _
    // Predicated region
    $region6: #{_mlp_forward_impl.1} parent=1 // pred_check
      _
    $region7: #{_mlp_forward_impl.1} parent=1 // pred_check_branch
      %16 = sbr.rel (0) target = $region9
    $region8: #{_mlp_forward_impl.1} parent=1 // pred_region
      _
    $region9: #{_mlp_forward_impl.1} parent=1 // pred_fallthru
      _
    // Predicated region
    $region10: #{_mlp_forward_impl.1} parent=1 // pred_check
      _
    $region11: #{_mlp_forward_impl.1} parent=1 // pred_check_branch
      %18 = sbr.rel (0) target = $region13
    $region12: #{_mlp_forward_impl.1} parent=1 // pred_region
      _
    $region13: #{_mlp_forward_impl.1} parent=1 // pred_fallthru
      _
    // Predicated region
    $region14: #{_mlp_forward_impl.1} parent=1 // pred_check
      _
    $region15: #{_mlp_forward_impl.1} parent=1 // pred_check_branch
      %20 = sbr.rel (0) target = $region17
    $region16: #{_mlp_forward_impl.1} parent=1 // pred_region
      _
    $region17: #{_mlp_forward_impl.1} parent=1 // pred_fallthru
      _
    // Predicated region
    $region18: #{_mlp_forward_impl.1} parent=1 // pred_check
      _
    $region19: #{_mlp_forward_impl.1} parent=1 // pred_check_branch
      %22 = sbr.rel (0) target = $region21
    $region20: #{_mlp_forward_impl.1} parent=1 // pred_region
      _
    $region21: #{_mlp_forward_impl.1} parent=1 // pred_fallthru
      _
    // Predicated region
    $region22: #{_mlp_forward_impl.1} parent=1 // pred_check
      _
    $region23: #{_mlp_forward_impl.1} parent=1 // pred_check_branch
      %24 = sbr.rel (0) target = $region25
    $region24: #{_mlp_forward_impl.1} parent=1 // pred_region
      _
    $region25: #{_mlp_forward_impl.1} parent=1 // pred_fallthru
      _
    // Predicated region
    $region26: #{_mlp_forward_impl.1} parent=1 // pred_check
      _
    $region27: #{_mlp_forward_impl.1} parent=1 // pred_check_branch
      %26 = sbr.rel (0) target = $region29
    $region28: #{_mlp_forward_impl.1} parent=1 // pred_region
      _
    $region29: #{_mlp_forward_impl.1} parent=1 // pred_fallthru
      _
    %v28 = vld [vmem:[%s0] sm:$0xf]
    %v29 = vld [vmem:[%s1] sm:$0xf]
    %v30 = vld [vmem:[%s1 + $0x4] sm:$0xf]
    %v31 = vld [vmem:[%s1 + $0x8] sm:$0xf]
    %v32 = vld [vmem:[%s1 + $0xc] sm:$0xf]
    %v33 = vld [vmem:[%s1 + $0x10] sm:$0xf]
    %v34 = vld [vmem:[%s1 + $0x14] sm:$0xf]
    %v35 = vld [vmem:[%s1 + $0x18] sm:$0xf]
    %v36 = vld [vmem:[%s1 + $0x1c] sm:$0xf]
    %v37 = vld [vmem:[%s1 + $0x20] sm:$0xf]
    %v38 = vld [vmem:[%s1 + $0x24] sm:$0xf]
    %v39 = vld [vmem:[%s1 + $0x28] sm:$0xf]
    %v40 = vld [vmem:[%s1 + $0x2c] sm:$0xf]
    %v41 = vld [vmem:[%s1 + $0x30] sm:$0xf]
    %v42 = vld [vmem:[%s1 + $0x34] sm:$0xf]
    %v43 = vld [vmem:[%s1 + $0x38] sm:$0xf]
    %v44 = vld [vmem:[%s1 + $0x3c] sm:$0xf]
    %v45 = vld [vmem:[%s2] sm:$0x1]
    %v47 = vlaneseq
    %v48 = vshrl.u32 %v47, 7
    %v49 = vsub.s32 0, %v48
    %v50 = vrot.slane %v45, %v49
    %v68 = vunpack.c.l.b16 %v29
    %v69 = vunpack.c.l.b16 %v30
    %v70 = vunpack.c.l.b16 %v31
    %v71 = vunpack.c.l.b16 %v32
    %v72 = vunpack.c.l.b16 %v33
    %v73 = vunpack.c.l.b16 %v34
    %v74 = vunpack.c.l.b16 %v35
    %v75 = vunpack.c.l.b16 %v36
    %v76 = vunpack.c.l.b16 %v37
    %v77 = vunpack.c.l.b16 %v38
    %v78 = vunpack.c.l.b16 %v39
    %v79 = vunpack.c.l.b16 %v40
    %v80 = vunpack.c.l.b16 %v41
    %v81 = vunpack.c.l.b16 %v42
    %v82 = vunpack.c.l.b16 %v43
    %v83 = vunpack.c.l.b16 %v44
    %v84 = vpack.c.b16 %v69, %v68
    %v85 = vpack.c.b16 %v71, %v70
    %v86 = vpack.c.b16 %v73, %v72
    %v87 = vpack.c.b16 %v75, %v74
    %v88 = vpack.c.b16 %v77, %v76
    %v89 = vpack.c.b16 %v79, %v78
    %v90 = vpack.c.b16 %v81, %v80
    %v91 = vpack.c.b16 %v83, %v82
    %100 = vmatprep.subr.bf16.mxu0 0
    %101 = vmatpush1.bf16.msra.mxu0 %v84
    %102 = vmatprep.subr.bf16.mxu0 0
    %103 = vmatpush1.bf16.msra.mxu0 %v85
    %104 = vmatprep.subr.bf16.mxu0 0
    %105 = vmatpush1.bf16.msra.mxu0 %v86
    %106 = vmatprep.subr.bf16.mxu0 0
    %107 = vmatpush1.bf16.msra.mxu0 %v87
    %108 = vmatprep.subr.bf16.mxu0 0
    %109 = vmatpush1.bf16.msra.mxu0 %v88
    %110 = vmatprep.subr.bf16.mxu0 0
    %111 = vmatpush1.bf16.msra.mxu0 %v89
    %112 = vmatprep.subr.bf16.mxu0 0
    %113 = vmatpush1.bf16.msra.mxu0 %v90
    %114 = vmatprep.subr.bf16.mxu0 0
    %115 = vmatpush1.bf16.msra.mxu0 %v91
    %116 = vmatprep.subr.bf16.mxu0 0
    %117 = vmatpush1.bf16.msra.mxu0 0
    %118 = vmatprep.subr.bf16.mxu0 0
    %119 = vmatpush1.bf16.msra.mxu0 0
    %120 = vmatprep.subr.bf16.mxu0 0
    %121 = vmatpush1.bf16.msra.mxu0 0
    %122 = vmatprep.subr.bf16.mxu0 0
    %123 = vmatpush1.bf16.msra.mxu0 0
    %124 = vmatprep.subr.bf16.mxu0 0
    %125 = vmatpush1.bf16.msra.mxu0 0
    %126 = vmatprep.subr.bf16.mxu0 0
    %127 = vmatpush1.bf16.msra.mxu0 0
    %128 = vmatprep.subr.bf16.mxu0 0
    %129 = vmatpush1.bf16.msra.mxu0 0
    %130 = vmatprep.subr.bf16.mxu0 0
    %131 = vmatpush1.bf16.msra.mxu0 0
    %132 = vmatprep.mubr.bf16.mxu0 0
    %133 = vmatmul.mubr.bf16.gmra.mrb[0].mxu0 %v28
    %v134 = vpop.f32.mrb[0].mxu0
    %v135 = vadd.f32 %v50, %v134
    %v136 = vpop.f32.mrb[0].mxu0
    %v137 = vpop.f32.mrb[0].mxu0
    %v138 = vpop.f32.mrb[0].mxu0
    %139 = vdwg.mxu0
    %v140 = vmul.f32 %v135, 0.044715
    %v141 = vmul.f32 %v140, %v135
    %v142 = vmul.f32 %v141, %v135
    %v143 = vadd.f32 %v135, %v142
    %v144 = vmul.f32 %v143, 0.7978846
    %v145 = vmul.f32 %v135, 0.5
    %v146 = vtanh.pop %v144
    %v147 = vadd.f32 %v146, 1.0
    %v148 = vmul.f32 %v145, %v147
    %v149 = vpack.c.bf16 %v148, %v148
    %v150 = vld [vmem:[%s3] sm:$0xf]
    %v151 = vld [vmem:[%s3 + $0x4] sm:$0xf]
    %v152 = vld [vmem:[%s3 + $0x8] sm:$0xf]
    %v153 = vld [vmem:[%s3 + $0xc] sm:$0xf]
    %v154 = vld [vmem:[%s3 + $0x10] sm:$0xf]
    %v155 = vld [vmem:[%s3 + $0x14] sm:$0xf]
    %v156 = vld [vmem:[%s3 + $0x18] sm:$0xf]
    %v157 = vld [vmem:[%s3 + $0x1c] sm:$0xf]
    %v158 = vld [vmem:[%s3 + $0x20] sm:$0xf]
    %v159 = vld [vmem:[%s3 + $0x24] sm:$0xf]
    %v160 = vld [vmem:[%s3 + $0x28] sm:$0xf]
    %v161 = vld [vmem:[%s3 + $0x2c] sm:$0xf]
    %v162 = vld [vmem:[%s3 + $0x30] sm:$0xf]
    %v163 = vld [vmem:[%s3 + $0x34] sm:$0xf]
    %v164 = vld [vmem:[%s3 + $0x38] sm:$0xf]
    %v165 = vld [vmem:[%s3 + $0x3c] sm:$0xf]
    %v166 = vld [vmem:[%s4] sm:$0x1]
    %v168 = vlaneseq
    %v169 = vshrl.u32 %v168, 7
    %v170 = vsub.s32 0, %v169
    %v171 = vrot.slane %v166, %v170
    %v189 = vunpack.c.l.b16 %v150
    %v190 = vunpack.c.l.b16 %v151
    %v191 = vunpack.c.l.b16 %v152
    %v192 = vunpack.c.l.b16 %v153
    %v193 = vunpack.c.l.b16 %v154
    %v194 = vunpack.c.l.b16 %v155
    %v195 = vunpack.c.l.b16 %v156
    %v196 = vunpack.c.l.b16 %v157
    %v197 = vunpack.c.l.b16 %v158
    %v198 = vunpack.c.l.b16 %v159
    %v199 = vunpack.c.l.b16 %v160
    %v200 = vunpack.c.l.b16 %v161
    %v201 = vunpack.c.l.b16 %v162
    %v202 = vunpack.c.l.b16 %v163
    %v203 = vunpack.c.l.b16 %v164
    %v204 = vunpack.c.l.b16 %v165
    %v205 = vpack.c.b16 %v190, %v189
    %v206 = vpack.c.b16 %v192, %v191
    %v207 = vpack.c.b16 %v194, %v193
    %v208 = vpack.c.b16 %v196, %v195
    %v209 = vpack.c.b16 %v198, %v197
    %v210 = vpack.c.b16 %v200, %v199
    %v211 = vpack.c.b16 %v202, %v201
    %v212 = vpack.c.b16 %v204, %v203
    %221 = vmatprep.subr.bf16.mxu0 0
    %222 = vmatpush1.bf16.msra.mxu0 %v205
    %223 = vmatprep.subr.bf16.mxu0 0
    %224 = vmatpush1.bf16.msra.mxu0 %v206
    %225 = vmatprep.subr.bf16.mxu0 0
    %226 = vmatpush1.bf16.msra.mxu0 %v207
    %227 = vmatprep.subr.bf16.mxu0 0
    %228 = vmatpush1.bf16.msra.mxu0 %v208
    %229 = vmatprep.subr.bf16.mxu0 0
    %230 = vmatpush1.bf16.msra.mxu0 %v209
    %231 = vmatprep.subr.bf16.mxu0 0
    %232 = vmatpush1.bf16.msra.mxu0 %v210
    %233 = vmatprep.subr.bf16.mxu0 0
    %234 = vmatpush1.bf16.msra.mxu0 %v211
    %235 = vmatprep.subr.bf16.mxu0 0
    %236 = vmatpush1.bf16.msra.mxu0 %v212
    %237 = vmatprep.subr.bf16.mxu0 0
    %238 = vmatpush1.bf16.msra.mxu0 0
    %239 = vmatprep.subr.bf16.mxu0 0
    %240 = vmatpush1.bf16.msra.mxu0 0
    %241 = vmatprep.subr.bf16.mxu0 0
    %242 = vmatpush1.bf16.msra.mxu0 0
    %243 = vmatprep.subr.bf16.mxu0 0
    %244 = vmatpush1.bf16.msra.mxu0 0
    %245 = vmatprep.subr.bf16.mxu0 0
    %246 = vmatpush1.bf16.msra.mxu0 0
    %247 = vmatprep.subr.bf16.mxu0 0
    %248 = vmatpush1.bf16.msra.mxu0 0
    %249 = vmatprep.subr.bf16.mxu0 0
    %250 = vmatpush1.bf16.msra.mxu0 0
    %251 = vmatprep.subr.bf16.mxu0 0
    %252 = vmatpush1.bf16.msra.mxu0 0
    %253 = vmatprep.mubr.bf16.mxu0 0
    %254 = vmatmul.mubr.bf16.gmra.mrb[0].mxu0 %v149
    %v255 = vpop.f32.mrb[0].mxu0
    %v256 = vadd.f32 %v171, %v255
    %v257 = vpop.f32.mrb[0].mxu0
    %v258 = vpop.f32.mrb[0].mxu0
    %v259 = vpop.f32.mrb[0].mxu0
    %260 = vdwg.mxu0
    %v261 = vmul.f32 %v256, 0.044715
    %v262 = vmul.f32 %v261, %v256
    %v263 = vmul.f32 %v262, %v256
    %v264 = vadd.f32 %v256, %v263
    %v265 = vmul.f32 %v264, 0.7978846
    %v266 = vmul.f32 %v256, 0.5
    %v267 = vtanh.pop %v265
    %v268 = vadd.f32 %v267, 1.0
    %v269 = vmul.f32 %v266, %v268
    %v270 = vld [vmem:[%s5] sm:$0x1]
    %v272 = vlaneseq
    %v273 = vshrl.u32 %v272, 7
    %v274 = vsub.s32 0, %v273
    %v275 = vrot.slane %v270, %v274
    %v277 = vmul.f32 %v269, %v275
    %v278 = vld [vmem:[%s6] sm:$0x1]
    %v280 = vlaneseq
    %v281 = vshrl.u32 %v280, 7
    %v282 = vsub.s32 0, %v281
    %v283 = vrot.slane %v278, %v282
    %v285 = vadd.f32 %v277, %v283
    %286 = vst [vmem:[#allocation2] sm:$0xff] %v285
    // Predicated region
    $region30: #{_mlp_forward_impl.1} parent=1 // pred_check
      _
    $region31: #{_mlp_forward_impl.1} parent=1 // pred_check_branch
      %288 = sbr.rel (0) target = $region33
    $region32: #{_mlp_forward_impl.1} parent=1 // pred_region
      %s290 = ssub.s32 128, 128
      %291 = vsyncadd [#allocation3], %s290
      %s293 = sshll.u32 [#allocation2], 4
      %s294 = int_to_ptr.vmem [resolvable:$true] %s293
      %296 = dma.vmem_to_hbm [thread:$0]  %s294, 128, %s7, [#allocation3]
    $region33: #{_mlp_forward_impl.1} parent=1 // pred_fallthru
      _
    // Predicated region
    $region34: #{_mlp_forward_impl.1} parent=1 // pred_check
      _
    $region35: #{_mlp_forward_impl.1} parent=1 // pred_check_branch
      %298 = sbr.rel (0) target = $region37
    $region36: #{_mlp_forward_impl.1} parent=1 // pred_region
      %299 = dma.done [#allocation3], 128
    $region37: #{_mlp_forward_impl.1} parent=1 // pred_fallthru
      _
    %300 = vsyncpa [#allocation3], 1

</llo_original>
